<compile_context>
chip_gen: v7x
topology: tpu7x:2x2x1
jax: 0.10.0
libtpu: 0.0.40
codegen_flags: <defaults>
</compile_context>

<pallas_src>
import functools

import jax
import jax.numpy as jnp
from jax.experimental import pallas as pl
from jax.experimental.pallas import tpu as pltpu


_VMEM = pl.BlockSpec(memory_space=pltpu.MemorySpace.VMEM)
_VMEM_LIMIT = 48 * 1024 * 1024   # < v7x 64 MiB physical, > v6e 32 MiB scoped default


def _round_up(x, m):
    return (x + m - 1) // m * m


# ----------------------------- Pallas kernels ------------------------------ #

def _conv_mm_kernel(x_ref, w_ref, b_ref, y_ref, stat_ref, acc_ref,
                    *, n_k, add_bias, act):
    """Tiled im2col matmul.  x:(TM,TK) bf16, w:(TK,Cp) bf16, b:(1,Cp) f32.

    Accumulates over the K grid axis in a f32 VMEM scratch.  The epilogue adds
    the bias / applies LeakyReLU (non-BN layers only) and always writes
    per-M-tile channel sum / sum-of-squares so BatchNorm statistics stay exact
    under M tiling (padded rows contribute exactly zero for BN layers since
    their bias is dropped)."""
    k = pl.program_id(1)

    @pl.when(k == 0)
    def _():
        acc_ref[...] = jnp.zeros_like(acc_ref)

    acc_ref[...] += jnp.dot(x_ref[...], w_ref[...],
                            preferred_element_type=jnp.float32)

    @pl.when(k == n_k - 1)
    def _():
        y = acc_ref[...]
        if add_bias:
            y = y + b_ref[...]
        # partial BN statistics for this M tile (pre-activation, f32).
        s = jnp.sum(y, axis=0, keepdims=True)
        ss = jnp.sum(y * y, axis=0, keepdims=True)
        pad = jnp.zeros((6, y.shape[1]), jnp.float32)
        stat_ref[...] = jnp.concatenate([s, ss, pad], axis=0)[None]
        if act:
            y = jnp.where(y > 0, y, 0.2 * y)          # LeakyReLU(0.2)
        y_ref[...] = y.astype(y_ref.dtype)


def _bn_act_kernel(y_ref, scale_ref, shift_ref, o_ref, *, act):
    """Elementwise BN affine (scale/shift precomputed from batch statistics)
    followed by LeakyReLU(0.2).  All math in f32 (v5e-friendly)."""
    y = y_ref[...] * scale_ref[...] + shift_ref[...]
    if act:
        y = jnp.where(y > 0, y, 0.2 * y)
    o_ref[...] = y.astype(o_ref.dtype)


def _avgpool_kernel(p00_ref, p01_ref, p10_ref, p11_ref, inv_ref, o_ref,
                    *, oh, ow):
    """AvgPool2d(3, stride=2, pad=1, count_include_pad=False).

    Inputs are the 4 stride-2 phases of the zero-padded NHWC activation; the
    9 taps are summed inside VMEM (no 9x HBM amplification) and scaled by the
    precomputed reciprocal valid-element count (multiply, not divide)."""
    phases = ((p00_ref, p01_ref), (p10_ref, p11_ref))
    acc = jnp.zeros(o_ref.shape, jnp.float32)
    for kh in range(3):
        for kw in range(3):
            pref = phases[kh % 2][kw % 2]
            acc = acc + pref[:, kh // 2:kh // 2 + oh, kw // 2:kw // 2 + ow, :]
    o_ref[...] = (acc * inv_ref[...]).astype(o_ref.dtype)


# ------------------------------ JAX glue ----------------------------------- #

def im2col(x_nhwc, kw, stride, pad):
    """Patch extraction (XLA glue; cast to bf16 first so the materialized
    patches carry half the HBM traffic).  All MACs stay inside the kernel.
    # TODO(synk): express the 16 (kh,kw) taps as shifted in-kernel windows
    # (pl.ANY + manual make_async_copy) to remove im2col HBM amplification.
    """
    x = x_nhwc.astype(jnp.bfloat16)
    N, H, W, C = x.shape
    xp = jnp.pad(x, ((0, 0), (pad, pad), (pad, pad), (0, 0)))
    OH = (H + 2 * pad - kw) // stride + 1
    OW = (W + 2 * pad - kw) // stride + 1
    cols = []
    for kh in range(kw):
        for kwi in range(kw):
            cols.append(xp[:, kh:kh + stride * OH:stride,
                           kwi:kwi + stride * OW:stride, :])
    patches = jnp.concatenate(cols, axis=-1)             # (N, OH, OW, kw*kw*C)
    return patches.reshape(N * OH * OW, kw * kw * C), (N, OH, OW)


def conv_layer(x_nhwc, p, *, eps=1e-5):
    """Conv2d(4x4, stride, pad=2) [+ BatchNorm2d(batch stats)] [+ LeakyReLU(0.2)]."""
    stride, cout = p["stride"], p["cout"]
    use_bn, use_act = p["use_bn"], p["use_act"]

    patches, (N, OH, OW) = im2col(x_nhwc, 4, stride, 2)
    M, K = patches.shape

    coutp = _round_up(cout, 128)                 # lane-dense output channels
    TM = min(512, _round_up(M, 8))               # M tile ("parallel" axis)
    Mp = _round_up(M, TM)
    TK = K if K <= 2048 else 2048                # K tile ("arbitrary" reduction axis)
    Kp = _round_up(K, TK)
    n_m, n_k = Mp // TM, Kp // TK

    # zero-padded bf16 operands; zero pad rows/cols contribute nothing.
    xb = jnp.zeros((Mp, Kp), jnp.bfloat16).at[:M, :K].set(patches)
    wb = jnp.zeros((Kp, coutp), jnp.bfloat16).at[:K, :cout].set(
        p["w"].astype(jnp.bfloat16))
    bb = jnp.zeros((1, coutp), jnp.float32).at[0, :cout].set(p["b"])

    kernel = functools.partial(
        _conv_mm_kernel, n_k=n_k,
        add_bias=not use_bn,            # bias exactly cancelled by BN mean-sub
        act=(use_act and not use_bn))   # fuse act here only if no BN pass follows

    y, stats = pl.pallas_call(
        kernel,
        out_shape=(jax.ShapeDtypeStruct((Mp, coutp), jnp.float32),
                   jax.ShapeDtypeStruct((n_m, 8, coutp), jnp.float32)),
        grid_spec=pltpu.PrefetchScalarGridSpec(
            num_scalar_prefetch=0,
            grid=(n_m, n_k),
            in_specs=[pl.BlockSpec((TM, TK), lambda i, k: (i, k)),
                      pl.BlockSpec((TK, coutp), lambda i, k: (k, 0)),
                      pl.BlockSpec((1, coutp), lambda i, k: (0, 0))],
            out_specs=[pl.BlockSpec((TM, coutp), lambda i, k: (i, 0)),
                       pl.BlockSpec((1, 8, coutp), lambda i, k: (i, 0, 0))],
            scratch_shapes=[pltpu.VMEM((TM, coutp), jnp.float32)]),
        compiler_params=pltpu.CompilerParams(
            dimension_semantics=("parallel", "arbitrary"),
            vmem_limit_bytes=_VMEM_LIMIT),
    )(xb, wb, bb)

    if use_bn:
        # Exact batch statistics across all M tiles (padded rows contribute 0
        # because the bias is dropped for BN layers).
        total = jnp.sum(stats[:, 0, :], axis=0)
        total_sq = jnp.sum(stats[:, 1, :], axis=0)
        mean = total / M
        var = jnp.maximum(total_sq / M - mean * mean, 0.0)  # biased (train-mode BN)
        gamma = jnp.zeros((coutp,), jnp.float32).at[:cout].set(p["gamma"])
        beta = jnp.zeros((coutp,), jnp.float32).at[:cout].set(p["beta"])
        scale = gamma * jax.lax.rsqrt(var + eps)
        shift = beta - mean * scale

        y = pl.pallas_call(
            functools.partial(_bn_act_kernel, act=use_act),
            out_shape=jax.ShapeDtypeStruct((Mp, coutp), jnp.float32),
            grid_spec=pltpu.PrefetchScalarGridSpec(
                num_scalar_prefetch=0,
                grid=(n_m,),
                in_specs=[pl.BlockSpec((TM, coutp), lambda i: (i, 0)),
                          pl.BlockSpec((1, coutp), lambda i: (0, 0)),
                          pl.BlockSpec((1, coutp), lambda i: (0, 0))],
                out_specs=pl.BlockSpec((TM, coutp), lambda i: (i, 0))),
            compiler_params=pltpu.CompilerParams(
                dimension_semantics=("parallel",),
                vmem_limit_bytes=_VMEM_LIMIT),
        )(y, scale.reshape(1, coutp), shift.reshape(1, coutp))

    return y[:M, :cout].reshape(N, OH, OW, cout)


def avgpool_3x3_s2_p1(x_nhwc):
    """nn.AvgPool2d(3, stride=2, padding=1, count_include_pad=False)."""
    N, H, W, C = x_nhwc.shape
    OH = (H + 2 - 3) // 2 + 1
    OW = (W + 2 - 3) // 2 + 1
    xp = jnp.pad(x_nhwc, ((0, 0), (1, 1), (1, 1), (0, 0)))
    # 4-phase (space-to-depth) split: pure re-layout, no tap duplication in HBM.
    phases = [xp[:, pr::2, pc::2, :] for pr in (0, 1) for pc in (0, 1)]

    # reciprocal valid-element counts (count_include_pad=False), broadcast over C.
    off = jnp.arange(3)
    rows = jnp.arange(OH) * 2 - 1
    cols = jnp.arange(OW) * 2 - 1
    ch = jnp.sum((rows[:, None] + off >= 0) & (rows[:, None] + off < H), axis=1)
    cw = jnp.sum((cols[:, None] + off >= 0) & (cols[:, None] + off < W), axis=1)
    inv = 1.0 / (ch[:, None] * cw[None, :]).astype(jnp.float32)        # (OH, OW)
    inv = jnp.broadcast_to(inv[None, :, :, None], (1, OH, OW, C))

    # TODO(synk): tile over N / output rows for full-resolution inputs; the
    # pooled activations in this config comfortably fit a single VMEM block.
    return pl.pallas_call(
        functools.partial(_avgpool_kernel, oh=OH, ow=OW),
        out_shape=jax.ShapeDtypeStruct((N, OH, OW, C), jnp.float32),
        in_specs=[_VMEM] * 5,
        out_specs=_VMEM,
    )(*phases, inv)


# -------------------------- model construction ----------------------------- #

def make_nlayer_params(key, input_nc, ndf, n_layers):
    """Deterministic synthetic params matching NLayerDiscriminator's layout.
    Conv weights stored as (kw*kw*cin, cout); bias kept even for BN layers for
    parameter-tree parity (it is mathematically cancelled by BN and unused)."""
    kw = 4
    specs = [(input_nc, ndf, 2, False, True)]          # conv + LeakyReLU
    nf = ndf
    for _ in range(1, n_layers):
        nf_prev, nf = nf, min(nf * 2, 512)
        specs.append((nf_prev, nf, 2, True, True))     # conv + BN + LeakyReLU
    nf_prev, nf = nf, min(nf * 2, 512)
    specs.append((nf_prev, nf, 1, True, True))         # conv(s=1) + BN + LReLU
    specs.append((nf, 1, 1, False, False))             # final conv(s=1)
    # use_sigmoid=False, getIntermFeat=False (module defaults)

    layers = []
    for cin, cout, stride, use_bn, use_act in specs:
        key, k1, k2 = jax.random.split(key, 3)
        w = jax.random.normal(k1, (kw, kw, cin, cout), jnp.float32) * 0.05
        layers.append(dict(
            w=w.reshape(kw * kw * cin, cout),
            b=jax.random.normal(k2, (cout,), jnp.float32) * 0.01,
            gamma=jnp.ones((cout,), jnp.float32),
            beta=jnp.zeros((cout,), jnp.float32),
            cin=cin, cout=cout,
            stride=stride, use_bn=use_bn, use_act=use_act))
    return layers, key


def nlayer_forward(layer_params, x_nhwc):
    h = x_nhwc
    for p in layer_params:
        h = conv_layer(h, p)
    return h


def multiscale_forward(all_params, x_nchw):
    """MultiscaleDiscriminator.forward (getIntermFeat=False)."""
    num_D = len(all_params)
    x = jnp.transpose(x_nchw, (0, 2, 3, 1))  # NCHW -> NHWC (channels on lanes)
    result = []
    x_ds = x
    for i in range(num_D):
        params = all_params[num_D - 1 - i]
        out_nhwc = nlayer_forward(params, x_ds)
        result.append([jnp.transpose(out_nhwc, (0, 3, 1, 2))])  # back to NCHW
        if i != num_D - 1:
            x_ds = avgpool_3x3_s2_p1(x_ds)
    return result


# ---------------------------------- main ------------------------------------ #

if __name__ == "__main__":
    # small config: input_nc=4, ndf=16, n_layers=3, num_D=3, input (2,4,16,16)
    input_nc, ndf, n_layers, num_D = 4, 16, 3, 3

    key = jax.random.PRNGKey(0)
    all_params = []
    for _ in range(num_D):
        layers, key = make_nlayer_params(key, input_nc, ndf, n_layers)
        all_params.append(layers)

    key, kx = jax.random.split(key)
    x = jax.random.normal(kx, (2, input_nc, 16, 16), jnp.float32)

    result = multiscale_forward(all_params, x)
    for scale_outs in result:
        for o in scale_outs:
            jax.block_until_ready(o)

    # sanity: 3 scales, each a single-channel patch map
    assert len(result) == num_D
    assert result[0][0].shape == (2, 1, 5, 5)   # full-res discriminator
    assert result[1][0].shape == (2, 1, 4, 4)   # 1x downsampled
    assert result[2][0].shape == (2, 1, 4, 4)   # 2x downsampled

    print("KERNEL_OK")
</pallas_src>

<mosaic_0001>
module attributes {stable_mosaic.version = 11 : i64} {
  func.func @_conv_mm_kernel(%arg0: i32, %arg1: i32, %arg2: memref<168x64xbf16, #tpu.memory_space<vmem>>, %arg3: memref<64x128xbf16, #tpu.memory_space<vmem>>, %arg4: memref<1x128xf32, #tpu.memory_space<vmem>>, %arg5: memref<168x128xf32, #tpu.memory_space<vmem>>, %arg6: memref<1x8x128xf32, #tpu.memory_space<vmem>>, %arg7: memref<168x128xf32, #tpu.memory_space<vmem>>) attributes {dimension_semantics = [#tpu.dimension_semantics<parallel>, #tpu.dimension_semantics<arbitrary>], iteration_bounds = array<i64: 1, 1>, scalar_prefetch = 0 : i64, scratch_operands = 1 : i64, tpu.core_type = #tpu.core_type<tc>, window_params = [{transform_indices = @transform_0, window_bounds = array<i64: 168, 64>}, {transform_indices = @transform_1, window_bounds = array<i64: 64, 128>}, {pipeline_mode = #tpu.pipeline_mode<synchronous>, transform_indices = @transform_2, window_bounds = array<i64: 1, 128>}, {transform_indices = @transform_3, window_bounds = array<i64: 168, 128>}, {transform_indices = @transform_4, window_bounds = array<i64: 1, 8, 128>}]} {
    %c0_i32 = arith.constant 0 : i32
    %0 = arith.cmpi eq, %arg1, %c0_i32 : i32
    %1 = arith.extui %0 : i1 to i32
    %c0_i32_0 = arith.constant 0 : i32
    %2 = arith.cmpi ne, %1, %c0_i32_0 : i32
    scf.if %2 {
      %cst_10 = arith.constant 0.000000e+00 : f32
      %12 = vector.broadcast %cst_10 : f32 to vector<168x128xf32>
      %c0_11 = arith.constant 0 : index
      %c0_12 = arith.constant 0 : index
      %13 = vector.load %arg7[%c0_11, %c0_12] : memref<168x128xf32, #tpu.memory_space<vmem>>, vector<168x128xf32>
      tpu.vector_store %arg7[%c0_11, %c0_12], %12 {strides = array<i32>} : memref<168x128xf32, #tpu.memory_space<vmem>>, vector<168x128xf32>,
    } else {
    }
    %c0 = arith.constant 0 : index
    %c0_1 = arith.constant 0 : index
    %3 = vector.load %arg7[%c0, %c0_1] : memref<168x128xf32, #tpu.memory_space<vmem>>, vector<168x128xf32>
    %c0_2 = arith.constant 0 : index
    %c0_3 = arith.constant 0 : index
    %4 = vector.load %arg2[%c0_2, %c0_3] : memref<168x64xbf16, #tpu.memory_space<vmem>>, vector<168x64xbf16>
    %c0_4 = arith.constant 0 : index
    %c0_5 = arith.constant 0 : index
    %5 = vector.load %arg3[%c0_4, %c0_5] : memref<64x128xbf16, #tpu.memory_space<vmem>>, vector<64x128xbf16>
    %cst = arith.constant dense<0.000000e+00> : vector<168x128xf32>
    %6 = tpu.matmul %4, %5, %cst {dimension_numbers = #tpu.dot_dimension_numbers<[1], [0], [0], [1], [0, 0, 1, 1], [], []>} : vector<168x64xbf16>, vector<64x128xbf16>, vector<168x128xf32> -> vector<168x128xf32>
    %7 = arith.addf %3, %6 : vector<168x128xf32>
    %c0_6 = arith.constant 0 : index
    %c0_7 = arith.constant 0 : index
    %8 = vector.load %arg7[%c0_6, %c0_7] : memref<168x128xf32, #tpu.memory_space<vmem>>, vector<168x128xf32>
    tpu.vector_store %arg7[%c0_6, %c0_7], %7 {strides = array<i32>} : memref<168x128xf32, #tpu.memory_space<vmem>>, vector<168x128xf32>,
    %c0_i32_8 = arith.constant 0 : i32
    %9 = arith.cmpi eq, %arg1, %c0_i32_8 : i32
    %10 = arith.extui %9 : i1 to i32
    %c0_i32_9 = arith.constant 0 : i32
    %11 = arith.cmpi ne, %10, %c0_i32_9 : i32
    scf.if %11 {
      %c0_10 = arith.constant 0 : index
      %c0_11 = arith.constant 0 : index
      %12 = vector.load %arg7[%c0_10, %c0_11] : memref<168x128xf32, #tpu.memory_space<vmem>>, vector<168x128xf32>
      %c0_12 = arith.constant 0 : index
      %c0_13 = arith.constant 0 : index
      %13 = vector.load %arg4[%c0_12, %c0_13] : memref<1x128xf32, #tpu.memory_space<vmem>>, vector<1x128xf32>
      %14 = vector.broadcast %13 : vector<1x128xf32> to vector<168x128xf32>
      %15 = arith.addf %12, %14 : vector<168x128xf32>
      %cst_14 = arith.constant dense<0.000000e+00> : vector<128xf32>
      %16 = vector.multi_reduction <add>, %15, %cst_14 [0] : vector<168x128xf32> to vector<128xf32>
      %17 = vector.shape_cast %16 : vector<128xf32> to vector<1x128xf32>
      %18 = arith.mulf %15, %15 : vector<168x128xf32>
      %cst_15 = arith.constant dense<0.000000e+00> : vector<128xf32>
      %19 = vector.multi_reduction <add>, %18, %cst_15 [0] : vector<168x128xf32> to vector<128xf32>
      %20 = vector.shape_cast %19 : vector<128xf32> to vector<1x128xf32>
      %cst_16 = arith.constant 0.000000e+00 : f32
      %21 = vector.broadcast %cst_16 : f32 to vector<6x128xf32>
      %22 = tpu.concatenate %17, %20, %21 in 0 : vector<1x128xf32>, vector<1x128xf32>, vector<6x128xf32> -> vector<8x128xf32>
      %23 = vector.shape_cast %22 : vector<8x128xf32> to vector<1x8x128xf32>
      %c0_17 = arith.constant 0 : index
      %c0_18 = arith.constant 0 : index
      %c0_19 = arith.constant 0 : index
      %24 = vector.load %arg6[%c0_17, %c0_18, %c0_19] : memref<1x8x128xf32, #tpu.memory_space<vmem>>, vector<1x8x128xf32>
      tpu.vector_store %arg6[%c0_17, %c0_18, %c0_19], %23 {strides = array<i32>} : memref<1x8x128xf32, #tpu.memory_space<vmem>>, vector<1x8x128xf32>,
      %cst_20 = arith.constant 0.000000e+00 : f32
      %25 = vector.broadcast %cst_20 : f32 to vector<168x128xf32>
      %26 = arith.cmpf ogt, %15, %25 : vector<168x128xf32>
      %cst_21 = arith.constant 2.000000e-01 : f32
      %27 = vector.broadcast %cst_21 : f32 to vector<168x128xf32>
      %28 = arith.mulf %27, %15 : vector<168x128xf32>
      %29 = arith.select %26, %15, %28 : vector<168x128xi1>, vector<168x128xf32>
      %c0_22 = arith.constant 0 : index
      %c0_23 = arith.constant 0 : index
      %30 = vector.load %arg5[%c0_22, %c0_23] : memref<168x128xf32, #tpu.memory_space<vmem>>, vector<168x128xf32>
      tpu.vector_store %arg5[%c0_22, %c0_23], %29 {strides = array<i32>} : memref<168x128xf32, #tpu.memory_space<vmem>>, vector<168x128xf32>,
    } else {
    }
    return
  }
  func.func @transform_0(%arg0: i32, %arg1: i32) -> (i32, i32) {
    %c0_i32 = arith.constant 0 : i32
    return %arg0, %arg1 : i32, i32
  }
  func.func @transform_1(%arg0: i32, %arg1: i32) -> (i32, i32) {
    %c0_i32 = arith.constant 0 : i32
    %c0_i32_0 = arith.constant 0 : i32
    return %arg1, %c0_i32 : i32, i32
  }
  func.func @transform_2(%arg0: i32, %arg1: i32) -> (i32, i32) {
    %c0_i32 = arith.constant 0 : i32
    %c0_i32_0 = arith.constant 0 : i32
    %c0_i32_1 = arith.constant 0 : i32
    return %c0_i32, %c0_i32_0 : i32, i32
  }
  func.func @transform_3(%arg0: i32, %arg1: i32) -> (i32, i32) {
    %c0_i32 = arith.constant 0 : i32
    %c0_i32_0 = arith.constant 0 : i32
    return %arg0, %c0_i32 : i32, i32
  }
  func.func @transform_4(%arg0: i32, %arg1: i32) -> (i32, i32, i32) {
    %c0_i32 = arith.constant 0 : i32
    %c0_i32_0 = arith.constant 0 : i32
    %c0_i32_1 = arith.constant 0 : i32
    return %arg0, %c0_i32, %c0_i32_0 : i32, i32, i32
  }
}

</mosaic_0001>

<llo_original>
// kernel: tpu_custom_call.1
$region0: #{tpu_custom_call.1}
  #allocation0 [shape = 'u32[]', space=smem, size = 0x4, offset = 0x4, fixed_abs, tag = 'smem constant byte address 0x4 - core index']
  #allocation1 [shape = 'u32[144,128]{1,0:T(1,128)}', space=vmem, size = 0x12000, scoped, tag = 'internal scratch']
  #allocation2 [shape = 'f32[168,128]{1,0:T(8,128)}', space=vmem, size = 0x15000, scoped, tag = 'scratch operand']
  %s0 = inlined_call_operand.vmem [shape: bf16[168,64], index: 0, kind: input, shape index: {}]
  %s1 = inlined_call_operand.vmem [shape: bf16[64,128], index: 1, kind: input, shape index: {}]
  %s2 = inlined_call_operand.vmem [shape: f32[1,128], index: 2, kind: input, shape index: {}]
  %s3 = inlined_call_operand.hbm [shape: f32[168,128], index: 3, kind: output, shape index: {0}]
  %s4 = inlined_call_operand.hbm [shape: f32[1,8,128], index: 4, kind: output, shape index: {1}]
  %5 = xla_tuple %s3, %s4
  %s6 = sld [smem:[#allocation0]]
  $region38: #{tpu_custom_call.1} parent=0
    _
  %s8 = ssub.s32 1, %s6
  %s9 = scalar_select 0, %s8, %s6
  $region1: #{tpu_custom_call.1} parent=0
    #allocation3 [shape = 'u8[86016]{0}', space=vmem, size = 0x15000, scoped, tag = 'output window, operand 0, single buffered']
    #allocation4 [shape = 's32[1]{0}', space=sflag, size = 0x4, scoped, tag = 'scoped memory for tpu_custom_call.1']
    #allocation5 [shape = 'u8[4096]{0}', space=vmem, size = 0x1000, scoped, tag = 'output window, operand 1, single buffered']
    #allocation6 [shape = 's32[1]{0}', space=sflag, size = 0x4, scoped, tag = 'scoped memory for tpu_custom_call.1']
    %10 = vsyncpa [#allocation4], 0
    %11 = vsyncpa [#allocation6], 0
    // Predicated region
    $region2: #{tpu_custom_call.1} parent=1 // pred_check
      _
    $region3: #{tpu_custom_call.1} parent=1 // pred_check_branch
      %13 = sbr.rel (0) target = $region5
    $region4: #{tpu_custom_call.1} parent=1 // pred_region
      _
    $region5: #{tpu_custom_call.1} parent=1 // pred_fallthru
      _
    // Predicated region
    $region6: #{tpu_custom_call.1} parent=1 // pred_check
      _
    $region7: #{tpu_custom_call.1} parent=1 // pred_check_branch
      %15 = sbr.rel (0) target = $region9
    $region8: #{tpu_custom_call.1} parent=1 // pred_region
      _
    $region9: #{tpu_custom_call.1} parent=1 // pred_fallthru
      _
    // Predicated region
    $region10: #{tpu_custom_call.1} parent=1 // pred_check
      _
    $region11: #{tpu_custom_call.1} parent=1 // pred_check_branch
      %17 = sbr.rel (0) target = $region13
    $region12: #{tpu_custom_call.1} parent=1 // pred_region
      _
    $region13: #{tpu_custom_call.1} parent=1 // pred_fallthru
      _
    %p19 = scmp.eq.s32.totalorder 0, 0
    // Predicated region
    $region14: #{tpu_custom_call.1} parent=1 // pred_check
      %p20 = pneg %p19
    $region15: #{tpu_custom_call.1} parent=1 // pred_check_branch
      %22 = sbr.rel (%p20) target = $region17
    $region16: #{tpu_custom_call.1} parent=1 // pred_region
      %23 = vst [vmem:[#allocation2] sm:$0xff] 0.0
      %24 = vst [vmem:[#allocation2 + $0x8] sm:$0xff] 0.0
      %25 = vst [vmem:[#allocation2 + $0x10] sm:$0xff] 0.0
      %26 = vst [vmem:[#allocation2 + $0x18] sm:$0xff] 0.0
      %27 = vst [vmem:[#allocation2 + $0x20] sm:$0xff] 0.0
      %28 = vst [vmem:[#allocation2 + $0x28] sm:$0xff] 0.0
      %29 = vst [vmem:[#allocation2 + $0x30] sm:$0xff] 0.0
      %30 = vst [vmem:[#allocation2 + $0x38] sm:$0xff] 0.0
      %31 = vst [vmem:[#allocation2 + $0x40] sm:$0xff] 0.0
      %32 = vst [vmem:[#allocation2 + $0x48] sm:$0xff] 0.0
      %33 = vst [vmem:[#allocation2 + $0x50] sm:$0xff] 0.0
      %34 = vst [vmem:[#allocation2 + $0x58] sm:$0xff] 0.0
      %35 = vst [vmem:[#allocation2 + $0x60] sm:$0xff] 0.0
      %36 = vst [vmem:[#allocation2 + $0x68] sm:$0xff] 0.0
      %37 = vst [vmem:[#allocation2 + $0x70] sm:$0xff] 0.0
      %38 = vst [vmem:[#allocation2 + $0x78] sm:$0xff] 0.0
      %39 = vst [vmem:[#allocation2 + $0x80] sm:$0xff] 0.0
      %40 = vst [vmem:[#allocation2 + $0x88] sm:$0xff] 0.0
      %41 = vst [vmem:[#allocation2 + $0x90] sm:$0xff] 0.0
      %42 = vst [vmem:[#allocation2 + $0x98] sm:$0xff] 0.0
      %43 = vst [vmem:[#allocation2 + $0xa0] sm:$0xff] 0.0
    $region17: #{tpu_custom_call.1} parent=1 // pred_fallthru
      _
    %v44 = vld [vmem:[#allocation2] sm:$0xff]
    %v45 = vld [vmem:[#allocation2 + $0x8] sm:$0xff]
    %v46 = vld [vmem:[#allocation2 + $0x10] sm:$0xff]
    %v47 = vld [vmem:[#allocation2 + $0x18] sm:$0xff]
    %v48 = vld [vmem:[#allocation2 + $0x20] sm:$0xff]
    %v49 = vld [vmem:[#allocation2 + $0x28] sm:$0xff]
    %v50 = vld [vmem:[#allocation2 + $0x30] sm:$0xff]
    %v51 = vld [vmem:[#allocation2 + $0x38] sm:$0xff]
    %v52 = vld [vmem:[#allocation2 + $0x40] sm:$0xff]
    %v53 = vld [vmem:[#allocation2 + $0x48] sm:$0xff]
    %v54 = vld [vmem:[#allocation2 + $0x50] sm:$0xff]
    %v55 = vld [vmem:[#allocation2 + $0x58] sm:$0xff]
    %v56 = vld [vmem:[#allocation2 + $0x60] sm:$0xff]
    %v57 = vld [vmem:[#allocation2 + $0x68] sm:$0xff]
    %v58 = vld [vmem:[#allocation2 + $0x70] sm:$0xff]
    %v59 = vld [vmem:[#allocation2 + $0x78] sm:$0xff]
    %v60 = vld [vmem:[#allocation2 + $0x80] sm:$0xff]
    %v61 = vld [vmem:[#allocation2 + $0x88] sm:$0xff]
    %v62 = vld [vmem:[#allocation2 + $0x90] sm:$0xff]
    %v63 = vld [vmem:[#allocation2 + $0x98] sm:$0xff]
    %v64 = vld [vmem:[#allocation2 + $0xa0] sm:$0xff]
    %v65 = vld [vmem:[%s0] sm:$0xf]
    %v66 = vld [vmem:[%s0 + $0x4] sm:$0xf]
    %v67 = vld [vmem:[%s0 + $0x8] sm:$0xf]
    %v68 = vld [vmem:[%s0 + $0xc] sm:$0xf]
    %v69 = vld [vmem:[%s0 + $0x10] sm:$0xf]
    %v70 = vld [vmem:[%s0 + $0x14] sm:$0xf]
    %v71 = vld [vmem:[%s0 + $0x18] sm:$0xf]
    %v72 = vld [vmem:[%s0 + $0x1c] sm:$0xf]
    %v73 = vld [vmem:[%s0 + $0x20] sm:$0xf]
    %v74 = vld [vmem:[%s0 + $0x24] sm:$0xf]
    %v75 = vld [vmem:[%s0 + $0x28] sm:$0xf]
    %v76 = vld [vmem:[%s0 + $0x2c] sm:$0xf]
    %v77 = vld [vmem:[%s0 + $0x30] sm:$0xf]
    %v78 = vld [vmem:[%s0 + $0x34] sm:$0xf]
    %v79 = vld [vmem:[%s0 + $0x38] sm:$0xf]
    %v80 = vld [vmem:[%s0 + $0x3c] sm:$0xf]
    %v81 = vld [vmem:[%s0 + $0x40] sm:$0xf]
    %v82 = vld [vmem:[%s0 + $0x44] sm:$0xf]
    %v83 = vld [vmem:[%s0 + $0x48] sm:$0xf]
    %v84 = vld [vmem:[%s0 + $0x4c] sm:$0xf]
    %v85 = vld [vmem:[%s0 + $0x50] sm:$0xf]
    %v86 = vld [vmem:[%s1] sm:$0xf]
    %v87 = vld [vmem:[%s1 + $0x4] sm:$0xf]
    %v88 = vld [vmem:[%s1 + $0x8] sm:$0xf]
    %v89 = vld [vmem:[%s1 + $0xc] sm:$0xf]
    %v90 = vld [vmem:[%s1 + $0x10] sm:$0xf]
    %v91 = vld [vmem:[%s1 + $0x14] sm:$0xf]
    %v92 = vld [vmem:[%s1 + $0x18] sm:$0xf]
    %v93 = vld [vmem:[%s1 + $0x1c] sm:$0xf]
    %v115 = vunpack.c.l.b16 %v65
    %v116 = vunpack.c.l.b16 %v66
    %v117 = vunpack.c.l.b16 %v67
    %v118 = vunpack.c.l.b16 %v68
    %v119 = vunpack.c.l.b16 %v69
    %v120 = vunpack.c.l.b16 %v70
    %v121 = vunpack.c.l.b16 %v71
    %v122 = vunpack.c.l.b16 %v72
    %v123 = vunpack.c.l.b16 %v73
    %v124 = vunpack.c.l.b16 %v74
    %v125 = vunpack.c.l.b16 %v75
    %v126 = vunpack.c.l.b16 %v76
    %v127 = vunpack.c.l.b16 %v77
    %v128 = vunpack.c.l.b16 %v78
    %v129 = vunpack.c.l.b16 %v79
    %v130 = vunpack.c.l.b16 %v80
    %v131 = vunpack.c.l.b16 %v81
    %v132 = vunpack.c.l.b16 %v82
    %v133 = vunpack.c.l.b16 %v83
    %v134 = vunpack.c.l.b16 %v84
    %v135 = vunpack.c.l.b16 %v85
    %v136 = vpack.c.b16 %v116, %v115
    %v137 = vpack.c.b16 %v118, %v117
    %v138 = vpack.c.b16 %v120, %v119
    %v139 = vpack.c.b16 %v122, %v121
    %v140 = vpack.c.b16 %v124, %v123
    %v141 = vpack.c.b16 %v126, %v125
    %v142 = vpack.c.b16 %v128, %v127
    %v143 = vpack.c.b16 %v130, %v129
    %v144 = vpack.c.b16 %v132, %v131
    %v145 = vpack.c.b16 %v134, %v133
    %v146 = vpack.c.b16 %v135, %v135
    %v155 = vunpack.c.l.b16 %v86
    %v156 = vunpack.c.l.b16 %v87
    %v157 = vunpack.c.l.b16 %v88
    %v158 = vunpack.c.l.b16 %v89
    %v159 = vunpack.c.l.b16 %v90
    %v160 = vunpack.c.l.b16 %v91
    %v161 = vunpack.c.l.b16 %v92
    %v162 = vunpack.c.l.b16 %v93
    %v163 = vpack.c.b16 %v156, %v155
    %v164 = vpack.c.b16 %v158, %v157
    %v165 = vpack.c.b16 %v160, %v159
    %v166 = vpack.c.b16 %v162, %v161
    %vm171 = vcmask 523264
    %v173 = vsel %vm171, %v136, 0
    %v176 = vsel %vm171, %v137, 0
    %v179 = vsel %vm171, %v138, 0
    %v182 = vsel %vm171, %v139, 0
    %v185 = vsel %vm171, %v140, 0
    %v188 = vsel %vm171, %v141, 0
    %v191 = vsel %vm171, %v142, 0
    %v194 = vsel %vm171, %v143, 0
    %v197 = vsel %vm171, %v144, 0
    %v200 = vsel %vm171, %v145, 0
    %v203 = vsel %vm171, %v146, 0
    %205 = vmatprep.subr.bf16.mxu0 0
    %206 = vmatpush1.bf16.msra.mxu0 %v163
    %207 = vmatprep.subr.bf16.mxu0 0
    %208 = vmatpush1.bf16.msra.mxu0 %v164
    %209 = vmatprep.subr.bf16.mxu0 0
    %210 = vmatpush1.bf16.msra.mxu0 %v165
    %211 = vmatprep.subr.bf16.mxu0 0
    %212 = vmatpush1.bf16.msra.mxu0 %v166
    %213 = vmatprep.subr.bf16.mxu0 0
    %214 = vmatpush1.bf16.msra.mxu0 0
    %215 = vmatprep.subr.bf16.mxu0 0
    %216 = vmatpush1.bf16.msra.mxu0 0
    %217 = vmatprep.subr.bf16.mxu0 0
    %218 = vmatpush1.bf16.msra.mxu0 0
    %219 = vmatprep.subr.bf16.mxu0 0
    %220 = vmatpush1.bf16.msra.mxu0 0
    %221 = vmatprep.subr.bf16.mxu0 0
    %222 = vmatpush1.bf16.msra.mxu0 0
    %223 = vmatprep.subr.bf16.mxu0 0
    %224 = vmatpush1.bf16.msra.mxu0 0
    %225 = vmatprep.subr.bf16.mxu0 0
    %226 = vmatpush1.bf16.msra.mxu0 0
    %227 = vmatprep.subr.bf16.mxu0 0
    %228 = vmatpush1.bf16.msra.mxu0 0
    %229 = vmatprep.subr.bf16.mxu0 0
    %230 = vmatpush1.bf16.msra.mxu0 0
    %231 = vmatprep.subr.bf16.mxu0 0
    %232 = vmatpush1.bf16.msra.mxu0 0
    %233 = vmatprep.subr.bf16.mxu0 0
    %234 = vmatpush1.bf16.msra.mxu0 0
    %235 = vmatprep.subr.bf16.mxu0 0
    %236 = vmatpush1.bf16.msra.mxu0 0
    %237 = vmatprep.mubr.bf16.mxu0 0
    %238 = vmatmul.mubr.bf16.gmra.mrb[0].mxu0 %v173
    %v239 = vpop.f32.mrb[0].mxu0
    %v240 = vadd.f32 0.0, %v239
    %v241 = vpop.f32.mrb[0].mxu0
    %v242 = vpop.f32.mrb[0].mxu0
    %v243 = vadd.f32 0.0, %v242
    %v244 = vpop.f32.mrb[0].mxu0
    %245 = vmatprep.mubr.bf16.mxu0 0
    %246 = vmatmul.mubr.bf16.gmra.mrb[0].mxu0 %v176
    %v247 = vpop.f32.mrb[0].mxu0
    %v248 = vadd.f32 0.0, %v247
    %v249 = vpop.f32.mrb[0].mxu0
    %v250 = vpop.f32.mrb[0].mxu0
    %v251 = vadd.f32 0.0, %v250
    %v252 = vpop.f32.mrb[0].mxu0
    %253 = vmatprep.mubr.bf16.mxu0 0
    %254 = vmatmul.mubr.bf16.gmra.mrb[0].mxu0 %v179
    %v255 = vpop.f32.mrb[0].mxu0
    %v256 = vadd.f32 0.0, %v255
    %v257 = vpop.f32.mrb[0].mxu0
    %v258 = vpop.f32.mrb[0].mxu0
    %v259 = vadd.f32 0.0, %v258
    %v260 = vpop.f32.mrb[0].mxu0
    %261 = vmatprep.mubr.bf16.mxu0 0
    %262 = vmatmul.mubr.bf16.gmra.mrb[0].mxu0 %v182
    %v263 = vpop.f32.mrb[0].mxu0
    %v264 = vadd.f32 0.0, %v263
    %v265 = vpop.f32.mrb[0].mxu0
    %v266 = vpop.f32.mrb[0].mxu0
    %v267 = vadd.f32 0.0, %v266
    %v268 = vpop.f32.mrb[0].mxu0
    %269 = vmatprep.mubr.bf16.mxu0 0
    %270 = vmatmul.mubr.bf16.gmra.mrb[0].mxu0 %v185
    %v271 = vpop.f32.mrb[0].mxu0
    %v272 = vadd.f32 0.0, %v271
    %v273 = vpop.f32.mrb[0].mxu0
    %v274 = vpop.f32.mrb[0].mxu0
    %v275 = vadd.f32 0.0, %v274
    %v276 = vpop.f32.mrb[0].mxu0
    %277 = vmatprep.mubr.bf16.mxu0 0
    %278 = vmatmul.mubr.bf16.gmra.mrb[0].mxu0 %v188
    %v279 = vpop.f32.mrb[0].mxu0
    %v280 = vadd.f32 0.0, %v279
    %v281 = vpop.f32.mrb[0].mxu0
    %v282 = vpop.f32.mrb[0].mxu0
    %v283 = vadd.f32 0.0, %v282
    %v284 = vpop.f32.mrb[0].mxu0
    %285 = vmatprep.mubr.bf16.mxu0 0
    %286 = vmatmul.mubr.bf16.gmra.mrb[0].mxu0 %v191
    %v287 = vpop.f32.mrb[0].mxu0
    %v288 = vadd.f32 0.0, %v287
    %v289 = vpop.f32.mrb[0].mxu0
    %v290 = vpop.f32.mrb[0].mxu0
    %v291 = vadd.f32 0.0, %v290
    %v292 = vpop.f32.mrb[0].mxu0
    %293 = vmatprep.mubr.bf16.mxu0 0
    %294 = vmatmul.mubr.bf16.gmra.mrb[0].mxu0 %v194
    %v295 = vpop.f32.mrb[0].mxu0
    %v296 = vadd.f32 0.0, %v295
    %v297 = vpop.f32.mrb[0].mxu0
    %v298 = vpop.f32.mrb[0].mxu0
    %v299 = vadd.f32 0.0, %v298
    %v300 = vpop.f32.mrb[0].mxu0
    %301 = vmatprep.mubr.bf16.mxu0 0
    %302 = vmatmul.mubr.bf16.gmra.mrb[0].mxu0 %v197
    %v303 = vpop.f32.mrb[0].mxu0
    %v304 = vadd.f32 0.0, %v303
    %v305 = vpop.f32.mrb[0].mxu0
    %v306 = vpop.f32.mrb[0].mxu0
    %v307 = vadd.f32 0.0, %v306
    %v308 = vpop.f32.mrb[0].mxu0
    %309 = vmatprep.mubr.bf16.mxu0 0
    %310 = vmatmul.mubr.bf16.gmra.mrb[0].mxu0 %v200
    %v311 = vpop.f32.mrb[0].mxu0
    %v312 = vadd.f32 0.0, %v311
    %v313 = vpop.f32.mrb[0].mxu0
    %v314 = vpop.f32.mrb[0].mxu0
    %v315 = vadd.f32 0.0, %v314
    %v316 = vpop.f32.mrb[0].mxu0
    %317 = vmatprep.mubr.bf16.mxu0 0
    %318 = vmatmul.mubr.bf16.gmra.mrb[0].mxu0 %v203
    %v319 = vpop.f32.mrb[0].mxu0
    %v320 = vadd.f32 0.0, %v319
    %v321 = vpop.f32.mrb[0].mxu0
    %v322 = vpop.f32.mrb[0].mxu0
    %v323 = vpop.f32.mrb[0].mxu0
    %324 = vdwg.mxu0
    %v325 = vadd.f32 %v44, %v240
    %v326 = vadd.f32 %v45, %v243
    %v327 = vadd.f32 %v46, %v248
    %v328 = vadd.f32 %v47, %v251
    %v329 = vadd.f32 %v48, %v256
    %v330 = vadd.f32 %v49, %v259
    %v331 = vadd.f32 %v50, %v264
    %v332 = vadd.f32 %v51, %v267
    %v333 = vadd.f32 %v52, %v272
    %v334 = vadd.f32 %v53, %v275
    %v335 = vadd.f32 %v54, %v280
    %v336 = vadd.f32 %v55, %v283
    %v337 = vadd.f32 %v56, %v288
    %v338 = vadd.f32 %v57, %v291
    %v339 = vadd.f32 %v58, %v296
    %v340 = vadd.f32 %v59, %v299
    %v341 = vadd.f32 %v60, %v304
    %v342 = vadd.f32 %v61, %v307
    %v343 = vadd.f32 %v62, %v312
    %v344 = vadd.f32 %v63, %v315
    %v345 = vadd.f32 %v64, %v320
    %346 = vst [vmem:[#allocation2] sm:$0xff] %v325
    %347 = vst [vmem:[#allocation2 + $0x8] sm:$0xff] %v326
    %348 = vst [vmem:[#allocation2 + $0x10] sm:$0xff] %v327
    %349 = vst [vmem:[#allocation2 + $0x18] sm:$0xff] %v328
    %350 = vst [vmem:[#allocation2 + $0x20] sm:$0xff] %v329
    %351 = vst [vmem:[#allocation2 + $0x28] sm:$0xff] %v330
    %352 = vst [vmem:[#allocation2 + $0x30] sm:$0xff] %v331
    %353 = vst [vmem:[#allocation2 + $0x38] sm:$0xff] %v332
    %354 = vst [vmem:[#allocation2 + $0x40] sm:$0xff] %v333
    %355 = vst [vmem:[#allocation2 + $0x48] sm:$0xff] %v334
    %356 = vst [vmem:[#allocation2 + $0x50] sm:$0xff] %v335
    %357 = vst [vmem:[#allocation2 + $0x58] sm:$0xff] %v336
    %358 = vst [vmem:[#allocation2 + $0x60] sm:$0xff] %v337
    %359 = vst [vmem:[#allocation2 + $0x68] sm:$0xff] %v338
    %360 = vst [vmem:[#allocation2 + $0x70] sm:$0xff] %v339
    %361 = vst [vmem:[#allocation2 + $0x78] sm:$0xff] %v340
    %362 = vst [vmem:[#allocation2 + $0x80] sm:$0xff] %v341
    %363 = vst [vmem:[#allocation2 + $0x88] sm:$0xff] %v342
    %364 = vst [vmem:[#allocation2 + $0x90] sm:$0xff] %v343
    %365 = vst [vmem:[#allocation2 + $0x98] sm:$0xff] %v344
    %366 = vst [vmem:[#allocation2 + $0xa0] sm:$0xff] %v345
    // Predicated region
    $region18: #{tpu_custom_call.1} parent=1 // pred_check
      %p367 = pneg %p19
    $region19: #{tpu_custom_call.1} parent=1 // pred_check_branch
      %369 = sbr.rel (%p367) target = $region21
    $region20: #{tpu_custom_call.1} parent=1 // pred_region
      %v370 = vld [vmem:[#allocation2] sm:$0xff]
      %v371 = vld [vmem:[#allocation2 + $0x8] sm:$0xff]
      %v372 = vld [vmem:[#allocation2 + $0x10] sm:$0xff]
      %v373 = vld [vmem:[#allocation2 + $0x18] sm:$0xff]
      %v374 = vld [vmem:[#allocation2 + $0x20] sm:$0xff]
      %v375 = vld [vmem:[#allocation2 + $0x28] sm:$0xff]
      %v376 = vld [vmem:[#allocation2 + $0x30] sm:$0xff]
      %v377 = vld [vmem:[#allocation2 + $0x38] sm:$0xff]
      %v378 = vld [vmem:[#allocation2 + $0x40] sm:$0xff]
      %v379 = vld [vmem:[#allocation2 + $0x48] sm:$0xff]
      %v380 = vld [vmem:[#allocation2 + $0x50] sm:$0xff]
      %v381 = vld [vmem:[#allocation2 + $0x58] sm:$0xff]
      %v382 = vld [vmem:[#allocation2 + $0x60] sm:$0xff]
      %v383 = vld [vmem:[#allocation2 + $0x68] sm:$0xff]
      %v384 = vld [vmem:[#allocation2 + $0x70] sm:$0xff]
      %v385 = vld [vmem:[#allocation2 + $0x78] sm:$0xff]
      %v386 = vld [vmem:[#allocation2 + $0x80] sm:$0xff]
      %v387 = vld [vmem:[#allocation2 + $0x88] sm:$0xff]
      %v388 = vld [vmem:[#allocation2 + $0x90] sm:$0xff]
      %v389 = vld [vmem:[#allocation2 + $0x98] sm:$0xff]
      %v390 = vld [vmem:[#allocation2 + $0xa0] sm:$0xff]
      %v391 = vld [vmem:[%s2] sm:$0x1]
      %v393 = vlaneseq
      %v394 = vshrl.u32 %v393, 7
      %v395 = vsub.s32 0, %v394
      %v396 = vrot.slane %v391, %v395
      %v398 = vadd.f32 %v370, %v396
      %v399 = vadd.f32 %v371, %v396
      %v400 = vadd.f32 %v372, %v396
      %v401 = vadd.f32 %v373, %v396
      %v402 = vadd.f32 %v374, %v396
      %v403 = vadd.f32 %v375, %v396
      %v404 = vadd.f32 %v376, %v396
      %v405 = vadd.f32 %v377, %v396
      %v406 = vadd.f32 %v378, %v396
      %v407 = vadd.f32 %v379, %v396
      %v408 = vadd.f32 %v380, %v396
      %v409 = vadd.f32 %v381, %v396
      %v410 = vadd.f32 %v382, %v396
      %v411 = vadd.f32 %v383, %v396
      %v412 = vadd.f32 %v384, %v396
      %v413 = vadd.f32 %v385, %v396
      %v414 = vadd.f32 %v386, %v396
      %v415 = vadd.f32 %v387, %v396
      %v416 = vadd.f32 %v388, %v396
      %v417 = vadd.f32 %v389, %v396
      %v418 = vadd.f32 %v390, %v396
      %v419 = vadd.f32 %v398, %v399
      %v420 = vadd.f32 %v419, %v400
      %v421 = vadd.f32 %v420, %v401
      %v422 = vadd.f32 %v421, %v402
      %v423 = vadd.f32 %v422, %v403
      %v424 = vadd.f32 %v423, %v404
      %v425 = vadd.f32 %v424, %v405
      %v426 = vadd.f32 %v425, %v406
      %v427 = vadd.f32 %v426, %v407
      %v428 = vadd.f32 %v427, %v408
      %v429 = vadd.f32 %v428, %v409
      %v430 = vadd.f32 %v429, %v410
      %v431 = vadd.f32 %v430, %v411
      %v432 = vadd.f32 %v431, %v412
      %v433 = vadd.f32 %v432, %v413
      %v434 = vadd.f32 %v433, %v414
      %v435 = vadd.f32 %v434, %v415
      %v436 = vadd.f32 %v435, %v416
      %v437 = vadd.f32 %v436, %v417
      %v438 = vadd.f32 %v437, %v418
      %v439 = vrot.slane %v438, 4
      %v440 = vadd.f32 %v438, %v439
      %v441 = vrot.slane %v440, 2
      %v442 = vadd.f32 %v440, %v441
      %v443 = vrot.slane %v442, 1
      %v444 = vadd.f32 %v442, %v443
      %v445 = vmul.f32 %v398, %v398
      %v446 = vmul.f32 %v399, %v399
      %v447 = vmul.f32 %v400, %v400
      %v448 = vmul.f32 %v401, %v401
      %v449 = vmul.f32 %v402, %v402
      %v450 = vmul.f32 %v403, %v403
      %v451 = vmul.f32 %v404, %v404
      %v452 = vmul.f32 %v405, %v405
      %v453 = vmul.f32 %v406, %v406
      %v454 = vmul.f32 %v407, %v407
      %v455 = vmul.f32 %v408, %v408
      %v456 = vmul.f32 %v409, %v409
      %v457 = vmul.f32 %v410, %v410
      %v458 = vmul.f32 %v411, %v411
      %v459 = vmul.f32 %v412, %v412
      %v460 = vmul.f32 %v413, %v413
      %v461 = vmul.f32 %v414, %v414
      %v462 = vmul.f32 %v415, %v415
      %v463 = vmul.f32 %v416, %v416
      %v464 = vmul.f32 %v417, %v417
      %v465 = vmul.f32 %v418, %v418
      %v466 = vadd.f32 %v445, %v446
      %v467 = vadd.f32 %v466, %v447
      %v468 = vadd.f32 %v467, %v448
      %v469 = vadd.f32 %v468, %v449
      %v470 = vadd.f32 %v469, %v450
      %v471 = vadd.f32 %v470, %v451
      %v472 = vadd.f32 %v471, %v452
      %v473 = vadd.f32 %v472, %v453
      %v474 = vadd.f32 %v473, %v454
      %v475 = vadd.f32 %v474, %v455
      %v476 = vadd.f32 %v475, %v456
      %v477 = vadd.f32 %v476, %v457
      %v478 = vadd.f32 %v477, %v458
      %v479 = vadd.f32 %v478, %v459
      %v480 = vadd.f32 %v479, %v460
      %v481 = vadd.f32 %v480, %v461
      %v482 = vadd.f32 %v481, %v462
      %v483 = vadd.f32 %v482, %v463
      %v484 = vadd.f32 %v483, %v464
      %v485 = vadd.f32 %v484, %v465
      %v486 = vrot.slane %v485, 4
      %v487 = vadd.f32 %v485, %v486
      %v488 = vrot.slane %v487, 2
      %v489 = vadd.f32 %v487, %v488
      %v490 = vrot.slane %v489, 1
      %v491 = vadd.f32 %v489, %v490
      %vm492 = vcmask 1040384
      %v493 = vsel %vm492, %v444, %v491
      %vm494 = vcmask 1041408
      %v495 = vsel %vm494, %v493, 0.0
      %496 = vst [vmem:[#allocation5] sm:$0xff] %v495
      %vm497 = vcmp.gt.f32.partialorder %v398, 0.0
      %vm498 = vcmp.gt.f32.partialorder %v399, 0.0
      %vm499 = vcmp.gt.f32.partialorder %v400, 0.0
      %vm500 = vcmp.gt.f32.partialorder %v401, 0.0
      %vm501 = vcmp.gt.f32.partialorder %v402, 0.0
      %vm502 = vcmp.gt.f32.partialorder %v403, 0.0
      %vm503 = vcmp.gt.f32.partialorder %v404, 0.0
      %vm504 = vcmp.gt.f32.partialorder %v405, 0.0
      %vm505 = vcmp.gt.f32.partialorder %v406, 0.0
      %vm506 = vcmp.gt.f32.partialorder %v407, 0.0
      %vm507 = vcmp.gt.f32.partialorder %v408, 0.0
      %vm508 = vcmp.gt.f32.partialorder %v409, 0.0
      %vm509 = vcmp.gt.f32.partialorder %v410, 0.0
      %vm510 = vcmp.gt.f32.partialorder %v411, 0.0
      %vm511 = vcmp.gt.f32.partialorder %v412, 0.0
      %vm512 = vcmp.gt.f32.partialorder %v413, 0.0
      %vm513 = vcmp.gt.f32.partialorder %v414, 0.0
      %vm514 = vcmp.gt.f32.partialorder %v415, 0.0
      %vm515 = vcmp.gt.f32.partialorder %v416, 0.0
      %vm516 = vcmp.gt.f32.partialorder %v417, 0.0
      %vm517 = vcmp.gt.f32.partialorder %v418, 0.0
      %v518 = vmul.f32 %v398, 0.2
      %v519 = vmul.f32 %v399, 0.2
      %v520 = vmul.f32 %v400, 0.2
      %v521 = vmul.f32 %v401, 0.2
      %v522 = vmul.f32 %v402, 0.2
      %v523 = vmul.f32 %v403, 0.2
      %v524 = vmul.f32 %v404, 0.2
      %v525 = vmul.f32 %v405, 0.2
      %v526 = vmul.f32 %v406, 0.2
      %v527 = vmul.f32 %v407, 0.2
      %v528 = vmul.f32 %v408, 0.2
      %v529 = vmul.f32 %v409, 0.2
      %v530 = vmul.f32 %v410, 0.2
      %v531 = vmul.f32 %v411, 0.2
      %v532 = vmul.f32 %v412, 0.2
      %v533 = vmul.f32 %v413, 0.2
      %v534 = vmul.f32 %v414, 0.2
      %v535 = vmul.f32 %v415, 0.2
      %v536 = vmul.f32 %v416, 0.2
      %v537 = vmul.f32 %v417, 0.2
      %v538 = vmul.f32 %v418, 0.2
      %v539 = vsel %vm497, %v398, %v518
      %v540 = vsel %vm498, %v399, %v519
      %v541 = vsel %vm499, %v400, %v520
      %v542 = vsel %vm500, %v401, %v521
      %v543 = vsel %vm501, %v402, %v522
      %v544 = vsel %vm502, %v403, %v523
      %v545 = vsel %vm503, %v404, %v524
      %v546 = vsel %vm504, %v405, %v525
      %v547 = vsel %vm505, %v406, %v526
      %v548 = vsel %vm506, %v407, %v527
      %v549 = vsel %vm507, %v408, %v528
      %v550 = vsel %vm508, %v409, %v529
      %v551 = vsel %vm509, %v410, %v530
      %v552 = vsel %vm510, %v411, %v531
      %v553 = vsel %vm511, %v412, %v532
      %v554 = vsel %vm512, %v413, %v533
      %v555 = vsel %vm513, %v414, %v534
      %v556 = vsel %vm514, %v415, %v535
      %v557 = vsel %vm515, %v416, %v536
      %v558 = vsel %vm516, %v417, %v537
      %v559 = vsel %vm517, %v418, %v538
      %560 = vst [vmem:[#allocation3] sm:$0xff] %v539
      %561 = vst [vmem:[#allocation3 + $0x8] sm:$0xff] %v540
      %562 = vst [vmem:[#allocation3 + $0x10] sm:$0xff] %v541
      %563 = vst [vmem:[#allocation3 + $0x18] sm:$0xff] %v542
      %564 = vst [vmem:[#allocation3 + $0x20] sm:$0xff] %v543
      %565 = vst [vmem:[#allocation3 + $0x28] sm:$0xff] %v544
      %566 = vst [vmem:[#allocation3 + $0x30] sm:$0xff] %v545
      %567 = vst [vmem:[#allocation3 + $0x38] sm:$0xff] %v546
      %568 = vst [vmem:[#allocation3 + $0x40] sm:$0xff] %v547
      %569 = vst [vmem:[#allocation3 + $0x48] sm:$0xff] %v548
      %570 = vst [vmem:[#allocation3 + $0x50] sm:$0xff] %v549
      %571 = vst [vmem:[#allocation3 + $0x58] sm:$0xff] %v550
      %572 = vst [vmem:[#allocation3 + $0x60] sm:$0xff] %v551
      %573 = vst [vmem:[#allocation3 + $0x68] sm:$0xff] %v552
      %574 = vst [vmem:[#allocation3 + $0x70] sm:$0xff] %v553
      %575 = vst [vmem:[#allocation3 + $0x78] sm:$0xff] %v554
      %576 = vst [vmem:[#allocation3 + $0x80] sm:$0xff] %v555
      %577 = vst [vmem:[#allocation3 + $0x88] sm:$0xff] %v556
      %578 = vst [vmem:[#allocation3 + $0x90] sm:$0xff] %v557
      %579 = vst [vmem:[#allocation3 + $0x98] sm:$0xff] %v558
      %580 = vst [vmem:[#allocation3 + $0xa0] sm:$0xff] %v559
    $region21: #{tpu_custom_call.1} parent=1 // pred_fallthru
      _
    // Predicated region
    $region22: #{tpu_custom_call.1} parent=1 // pred_check
      _
    $region23: #{tpu_custom_call.1} parent=1 // pred_check_branch
      %582 = sbr.rel (0) target = $region25
    $region24: #{tpu_custom_call.1} parent=1 // pred_region
      %s584 = ssub.s32 2688, 2688
      %585 = vsyncadd [#allocation4], %s584
      %s586 = sshll.u32 [#allocation3], 4
      %s587 = int_to_ptr.vmem [resolvable:$true] %s586
      %592 = dma.vmem_to_hbm [thread:$0]  %s587, 2688, %s3, [#allocation4], 128, 128, 8
    $region25: #{tpu_custom_call.1} parent=1 // pred_fallthru
      _
    // Predicated region
    $region26: #{tpu_custom_call.1} parent=1 // pred_check
      _
    $region27: #{tpu_custom_call.1} parent=1 // pred_check_branch
      %594 = sbr.rel (0) target = $region29
    $region28: #{tpu_custom_call.1} parent=1 // pred_region
      %s596 = ssub.s32 128, 128
      %597 = vsyncadd [#allocation6], %s596
      %s599 = sshll.u32 [#allocation5], 4
      %s600 = int_to_ptr.vmem [resolvable:$true] %s599
      %602 = dma.vmem_to_hbm [thread:$0]  %s600, 128, %s4, [#allocation6]
    $region29: #{tpu_custom_call.1} parent=1 // pred_fallthru
      _
    // Predicated region
    $region30: #{tpu_custom_call.1} parent=1 // pred_check
      _
    $region31: #{tpu_custom_call.1} parent=1 // pred_check_branch
      %604 = sbr.rel (0) target = $region33
    $region32: #{tpu_custom_call.1} parent=1 // pred_region
      %605 = dma.done [#allocation4], 2688
    $region33: #{tpu_custom_call.1} parent=1 // pred_fallthru
      _
    // Predicated region
    $region34: #{tpu_custom_call.1} parent=1 // pred_check
      _
    $region35: #{tpu_custom_call.1} parent=1 // pred_check_branch
      %607 = sbr.rel (0) target = $region37
    $region36: #{tpu_custom_call.1} parent=1 // pred_region
      %608 = dma.done [#allocation6], 128
    $region37: #{tpu_custom_call.1} parent=1 // pred_fallthru
      _
    %609 = vsyncpa [#allocation4], 1
    %610 = vsyncpa [#allocation6], 1

</llo_original>
